<compile_context>
chip_gen: v5e
topology: v5e:2x2
jax: 0.10.0
libtpu: 0.0.40
codegen_flags: <defaults>
</compile_context>

<pallas_src>
import functools

import jax
import jax.numpy as jnp
import numpy as np
from jax.experimental import pallas as pl
from jax.experimental.pallas import tpu as pltpu

BN_EPS = 1e-5


def _elu(x):
    # ELU(alpha=1): x if x > 0 else exp(x) - 1   (exp guarded on discarded branch)
    return jnp.where(x > 0, x, jnp.exp(jnp.minimum(x, 0.0)) - 1.0)


def _round_up(x, m):
    return (x + m - 1) // m * m


def _choose_tiling(B, max_tile=2048):
    """Static (trace-time) batch tiling: (batch_tile, n_tiles)."""
    Bp = _round_up(max(B, 1), 16)
    if Bp <= 512:
        # Per-tile MXU work is tiny (~25 MFLOP/256 rows); splitting small
        # batches only adds ~0.35 us/step pipeline overhead.
        return Bp, 1
    # Large batch: >= 2 tiles (ideally even) so both v7x TensorCores get work,
    # tile sized from ceil(B / n_tiles) so padding waste stays < ~10%.
    n_tiles = max(2, pl.cdiv(Bp, max_tile))
    if n_tiles > 2 and n_tiles % 2:
        n_tiles += 1
    bt = _round_up(pl.cdiv(B, n_tiles), 16)
    return bt, n_tiles


# ---------------------------------------------------------------------------
# Kernel: six fused (BT, D) x (D, D) bf16 matmuls + element-wise glue.
# ---------------------------------------------------------------------------
def xvae_kernel(x_ref, w_ref, o_ref, *, D, eps_off, pass_off):
    x = x_ref[...]                                     # (BT, D) bf16 packed inputs
    lane = jax.lax.broadcasted_iota(jnp.int32, x.shape, 1)
    # Regenerate the constant-one bias lane in-kernel (one free VPU select)
    # instead of writing it from the wrapper.
    x = jnp.where(lane == D - 1, jnp.asarray(1.0, x.dtype), x)

    def fc(h, layer):
        w = w_ref[layer * D:(layer + 1) * D, :]        # (D, D) bf16, static slice
        return jnp.dot(h.astype(jnp.bfloat16), w,
                       preferred_element_type=jnp.float32)

    # ---- encoder ----
    h0 = _elu(fc(x, 0))      # [ELU(BN(fc_s1(s1))) || ELU(BN(fc_s2(s2)))]
    h1 = _elu(fc(h0, 1))     # ELU(BN(enc_fc2(concat)))
    zm = fc(h1, 2)           # mean | log_sigma | 0 | log_sigma(dup @eps_off) | 0

    # ---- reparameterization ----
    # lanes <  eps_off : keep (mean, log_sigma)
    # lanes >= eps_off : exp(log_sigma) * eps (z itself is summed by duplicated
    #                    rows inside the next weight matrix)
    comb = jnp.where(lane < eps_off, zm, jnp.exp(zm) * x.astype(jnp.float32))

    # ---- decoder ----
    # lanes >= pass_off are identity "passenger" lanes carrying mean / log_sigma /
    # z (and the constant-one bias lane) untouched by ELU to the output.
    # TODO(synk): nn.Dropout after dec_fc is identity in eval mode; train-mode
    # dropout masking is not implemented inside the kernel.
    d0 = fc(comb, 3)
    d = jnp.where(lane < pass_off, _elu(d0), d0)
    e0 = fc(d, 4)
    e = jnp.where(lane < pass_off, _elu(e0), e0)
    # Final sigmoid on the s2 lanes is applied in the wrapper on the sliced
    # output (saves one full-width EUP pass + select per tile).
    o_ref[...] = fc(e, 5)    # s1_lin | s2_lin(pre-sigmoid) | mean | log_sigma | z


# ---------------------------------------------------------------------------
# Offline parameter packing: BN folding + branch fusion + bias/passenger routing.
# ---------------------------------------------------------------------------
def pack_xvae_params(p, s1_in, s2_in, ds1, ds2, ds12, ls):
    eps_off = max(s1_in + s2_in, 2 * ls)
    pass_off = max(ds12, ds1 + ds2)
    out_off = s1_in + s2_in
    width = max(s1_in + s2_in, ds1 + ds2, ds12, 2 * ls,
                eps_off + ls, pass_off + 3 * ls, out_off + 3 * ls)
    D = _round_up(width + 1, 128)          # +1 lane for the constant-one bias lane
    bias_lane = D - 1

    def fold(w, b, bn):
        bn = np.asarray(bn, np.float64)
        g, beta, rm, rv = bn[0], bn[1], bn[2], bn[3]
        s = g / np.sqrt(rv + BN_EPS)
        return (np.asarray(w, np.float64) * s[None, :],
                (np.asarray(b, np.float64) - rm) * s + beta)

    W = np.zeros((6, D, D), np.float32)
    eye = np.eye(ls, dtype=np.float32)

    def put(l, r0, c0, mat):
        mat = np.asarray(mat, np.float32)
        W[l, r0:r0 + mat.shape[0], c0:c0 + mat.shape[1]] = mat

    def put_bias(l, c0, vec):
        vec = np.asarray(vec, np.float32)
        W[l, bias_lane, c0:c0 + vec.shape[0]] = vec

    # layer 0: block-diag(enc_fc1_s1, enc_fc1_s2), BN folded
    w, b = fold(p["w_e1s1"], p["b_e1s1"], p["bn_e1s1"])
    put(0, 0, 0, w); put_bias(0, 0, b)
    w, b = fold(p["w_e1s2"], p["b_e1s2"], p["bn_e1s2"])
    put(0, s1_in, ds1, w); put_bias(0, ds1, b)
    W[0, bias_lane, bias_lane] = 1.0

    # layer 1: enc_fc2 over concat(x1, x2), BN folded
    w, b = fold(p["w_e2"], p["b_e2"], p["bn_e2"])
    put(1, 0, 0, w); put_bias(1, 0, b)
    W[1, bias_lane, bias_lane] = 1.0

    # layer 2: [z_mean || z_log_sigma], log_sigma duplicated at eps_off (sampling)
    put(2, 0, 0, p["w_zm"]); put_bias(2, 0, p["b_zm"])
    put(2, 0, ls, p["w_zls"]); put_bias(2, ls, p["b_zls"])
    put(2, 0, eps_off, p["w_zls"]); put_bias(2, eps_off, p["b_zls"])
    # bias lane deliberately NOT routed: the kernel's where() regenerates the
    # constant 1 at lanes >= eps_off as exp(0) * 1 from the input slab.

    # layer 3: dec_fc (BN folded); z assembled via duplicated rows; passengers
    # mean / log_sigma / z routed to lanes [pass_off, pass_off + 3*ls)
    w, b = fold(p["w_dec"], p["b_dec"], p["bn_dec"])
    put(3, 0, 0, w); put(3, eps_off, 0, w); put_bias(3, 0, b)
    put(3, 0, pass_off, eye)                        # mean passenger
    put(3, ls, pass_off + ls, eye)                  # log_sigma passenger
    put(3, 0, pass_off + 2 * ls, eye)               # z = mean ...
    put(3, eps_off, pass_off + 2 * ls, eye)         #     ... + exp(log_sigma)*eps
    W[3, bias_lane, bias_lane] = 1.0

    # layer 4: [dec_fc_s1 || dec_fc_s2] (BN folded); passengers carried through
    w, b = fold(p["w_ds1"], p["b_ds1"], p["bn_ds1"])
    put(4, 0, 0, w); put_bias(4, 0, b)
    w, b = fold(p["w_ds2"], p["b_ds2"], p["bn_ds2"])
    put(4, 0, ds1, w); put_bias(4, ds1, b)
    for j in range(3):
        put(4, pass_off + j * ls, pass_off + j * ls, eye)
    W[4, bias_lane, bias_lane] = 1.0

    # layer 5: block-diag(out_s1, out_s2); passengers routed into output lanes
    put(5, 0, 0, p["w_o1"]); put_bias(5, 0, p["b_o1"])
    put(5, ds1, s1_in, p["w_o2"]); put_bias(5, s1_in, p["b_o2"])
    for j in range(3):
        put(5, pass_off + j * ls, out_off + j * ls, eye)

    # Guard the reparam/passenger trick: these regions must stay exactly zero,
    # otherwise the decode path is silently corrupted.
    assert not W[2][:, 2 * ls:eps_off].any(), "W2 lanes [2ls, eps_off) must be 0"
    assert not W[2][:, eps_off + ls:].any(), "W2 lanes >= eps_off+ls must be 0"
    assert not W[3][eps_off + ls:bias_lane, :].any(), "W3 dead-lane rows must be 0"

    w_slab = jnp.asarray(W.reshape(6 * D, D), dtype=jnp.bfloat16)
    meta = dict(D=D, s1_in=s1_in, s2_in=s2_in, ls=ls, eps_off=eps_off,
                pass_off=pass_off, out_off=out_off, bias_lane=bias_lane)
    return w_slab, meta


# ---------------------------------------------------------------------------
# Forward wrapper: pack input slab, tiled pallas_call, split the output slab.
# ---------------------------------------------------------------------------
def build_xvae_forward(meta, max_batch_tile=2048):
    D = meta["D"]
    s1_in, s2_in, ls = meta["s1_in"], meta["s2_in"], meta["ls"]
    eps_off, pass_off, out_off = meta["eps_off"], meta["pass_off"], meta["out_off"]

    kernel = functools.partial(xvae_kernel, D=D, eps_off=eps_off,
                               pass_off=pass_off)

    # Weight slab has a constant index_map (VMEM-resident across batch tiles);
    # request single buffering so no pointless second 192 KiB buffer is primed.
    try:
        w_spec = pl.BlockSpec((6 * D, D), lambda i: (0, 0),
                              pipeline_mode=pl.Buffered(1))
    except TypeError:   # BlockSpec without pipeline_mode support
        w_spec = pl.BlockSpec((6 * D, D), lambda i: (0, 0))

    @jax.jit
    def forward(w_slab, s1, s2, eps):
        B = s1.shape[0]
        BT, n_tiles = _choose_tiling(B, max_batch_tile)   # static at trace time
        Bp = BT * n_tiles

        # Single fused concat (+ one pad) building the lane-dense bf16 slab:
        #   s1 | s2 | 0.. | eps @ eps_off | 0..   (bias lane set in-kernel)
        gap = eps_off - (s1_in + s2_in)
        parts = [s1.astype(jnp.bfloat16), s2.astype(jnp.bfloat16)]
        if gap:
            parts.append(jnp.zeros((B, gap), jnp.bfloat16))
        parts.append(eps.astype(jnp.bfloat16))
        x = jnp.concatenate(parts, axis=1)                 # (B, eps_off + ls)
        x = jnp.pad(x, ((0, Bp - B), (0, D - x.shape[1])))

        out = pl.pallas_call(
            kernel,
            out_shape=jax.ShapeDtypeStruct((Bp, D), jnp.float32),
            grid=(n_tiles,),
            in_specs=[
                pl.BlockSpec((BT, D), lambda i: (i, 0)),   # activations: tiled
                w_spec,                                    # weights: resident
            ],
            out_specs=pl.BlockSpec((BT, D), lambda i: (i, 0)),
            compiler_params=pltpu.CompilerParams(
                dimension_semantics=("parallel",)),
            cost_estimate=pl.CostEstimate(
                flops=2 * Bp * 6 * D * D,
                transcendentals=7 * Bp * D,
                bytes_accessed=Bp * D * 2 + Bp * D * 4 + 6 * D * D * 2),
        )(x, w_slab)

        s1_out = out[:B, 0:s1_in]
        # Sigmoid hoisted out of the kernel; applied only to the s2 slice.
        s2_out = jax.nn.sigmoid(out[:B, s1_in:out_off])
        mean = out[:B, out_off:out_off + ls]
        log_sigma = out[:B, out_off + ls:out_off + 2 * ls]
        z = out[:B, out_off + 2 * ls:out_off + 3 * ls]
        return s1_out, s2_out, mean, log_sigma, z

    return forward


# ---------------------------------------------------------------------------
# Synthetic "trained" parameters (PyTorch-like layers, stored as (in, out)).
# ---------------------------------------------------------------------------
def init_xvae_params(key, s1_in, s2_in, ds1, ds2, ds12, ls):
    keys = iter(jax.random.split(key, 48))

    def lin(fan_in, fan_out):
        bound = 1.0 / np.sqrt(fan_in)
        w = jax.random.uniform(next(keys), (fan_in, fan_out), jnp.float32, -bound, bound)
        b = jax.random.uniform(next(keys), (fan_out,), jnp.float32, -bound, bound)
        return w, b

    def bn(d):
        gamma = 1.0 + 0.1 * jax.random.normal(next(keys), (d,), jnp.float32)
        beta = 0.1 * jax.random.normal(next(keys), (d,), jnp.float32)
        rmean = 0.1 * jax.random.normal(next(keys), (d,), jnp.float32)
        rvar = 1.0 + 0.1 * jax.random.uniform(next(keys), (d,), jnp.float32)
        return jnp.stack([gamma, beta, rmean, rvar], axis=0)     # (4, d)

    p = {}
    p["w_e1s1"], p["b_e1s1"] = lin(s1_in, ds1); p["bn_e1s1"] = bn(ds1)
    p["w_e1s2"], p["b_e1s2"] = lin(s2_in, ds2); p["bn_e1s2"] = bn(ds2)
    p["w_e2"], p["b_e2"] = lin(ds1 + ds2, ds12); p["bn_e2"] = bn(ds12)
    p["w_zm"], p["b_zm"] = lin(ds12, ls)
    p["w_zls"], p["b_zls"] = lin(ds12, ls)
    p["w_dec"], p["b_dec"] = lin(ls, ds12); p["bn_dec"] = bn(ds12)
    p["w_ds1"], p["b_ds1"] = lin(ds12, ds1); p["bn_ds1"] = bn(ds1)
    p["w_ds2"], p["b_ds2"] = lin(ds12, ds2); p["bn_ds2"] = bn(ds2)
    p["w_o1"], p["b_o1"] = lin(ds1, s1_in)
    p["w_o2"], p["b_o2"] = lin(ds2, s2_in)
    return p


def xvae_reference(p, s1, s2, eps):
    """Plain-JAX f32 reference of the eval-mode forward (for validation)."""
    def bn(x, b):
        g, beta, rm, rv = b[0], b[1], b[2], b[3]
        return (x - rm) * jax.lax.rsqrt(rv + BN_EPS) * g + beta

    x1 = _elu(bn(s1 @ p["w_e1s1"] + p["b_e1s1"], p["bn_e1s1"]))
    x2 = _elu(bn(s2 @ p["w_e1s2"] + p["b_e1s2"], p["bn_e1s2"]))
    h = _elu(bn(jnp.concatenate([x1, x2], axis=1) @ p["w_e2"] + p["b_e2"], p["bn_e2"]))
    mean = h @ p["w_zm"] + p["b_zm"]
    log_sigma = h @ p["w_zls"] + p["b_zls"]
    z = mean + jnp.exp(log_sigma) * eps
    d = _elu(bn(z @ p["w_dec"] + p["b_dec"], p["bn_dec"]))
    d1 = _elu(bn(d @ p["w_ds1"] + p["b_ds1"], p["bn_ds1"]))
    d2 = _elu(bn(d @ p["w_ds2"] + p["b_ds2"], p["bn_ds2"]))
    s1_out = d1 @ p["w_o1"] + p["b_o1"]
    s2_out = jax.nn.sigmoid(d2 @ p["w_o2"] + p["b_o2"])
    return s1_out, s2_out, mean, log_sigma, z


def _check(outs, refs, B, s1_in, s2_in, ls):
    s1_out, s2_out, mean, log_sigma, z = outs
    assert s1_out.shape == (B, s1_in) and s2_out.shape == (B, s2_in)
    assert mean.shape == (B, ls) and log_sigma.shape == (B, ls) and z.shape == (B, ls)
    assert bool(jnp.all(jnp.isfinite(jnp.concatenate([o.reshape(-1) for o in outs]))))
    assert bool(jnp.all((s2_out >= 0.0) & (s2_out <= 1.0)))
    # Numerical check vs plain-JAX f32 reference (kernel I/O + matmuls in bf16).
    for got, ref in zip(outs, refs):
        tol = 0.1 * max(1.0, float(jnp.max(jnp.abs(ref))))
        err = float(jnp.max(jnp.abs(got - ref)))
        assert err < tol, f"max abs err {err} > tol {tol}"


if __name__ == "__main__":
    # Small shapes consistent with the module: two modalities + latent space.
    S1_IN, S2_IN = 16, 24
    DS1, DS2, DS12, LS = 32, 32, 32, 16

    key = jax.random.PRNGKey(0)
    k_p, k_s1, k_s2, k_eps = jax.random.split(key, 4)

    params = init_xvae_params(k_p, S1_IN, S2_IN, DS1, DS2, DS12, LS)
    w_slab, meta = pack_xvae_params(params, S1_IN, S2_IN, DS1, DS2, DS12, LS)
    forward = build_xvae_forward(meta)

    # --- small batch (single tile) ---
    B = 8
    s1 = jax.random.normal(k_s1, (B, S1_IN), jnp.float32)
    s2 = (jax.random.uniform(k_s2, (B, S2_IN)) > 0.5).astype(jnp.float32)  # binary modality
    eps = jax.random.normal(k_eps, (B, LS), jnp.float32)
    outs = jax.block_until_ready(forward(w_slab, s1, s2, eps))
    _check(outs, xvae_reference(params, s1, s2, eps), B, S1_IN, S2_IN, LS)

    # --- larger batch: exercises the >=2-tile (both-TC) path with padding ---
    B2 = 520
    s1b = jax.random.normal(k_s1, (B2, S1_IN), jnp.float32)
    s2b = (jax.random.uniform(k_s2, (B2, S2_IN)) > 0.5).astype(jnp.float32)
    epsb = jax.random.normal(k_eps, (B2, LS), jnp.float32)
    outs2 = jax.block_until_ready(forward(w_slab, s1b, s2b, epsb))
    _check(outs2, xvae_reference(params, s1b, s2b, epsb), B2, S1_IN, S2_IN, LS)

    print("KERNEL_OK")
</pallas_src>

<mosaic_0001>
module attributes {stable_mosaic.version = 11 : i64} {
  func.func @xvae_kernel(%arg0: i32, %arg1: memref<16x128xbf16, #tpu.memory_space<vmem>>, %arg2: memref<768x128xbf16, #tpu.memory_space<vmem>>, %arg3: memref<16x128xf32, #tpu.memory_space<vmem>>) attributes {dimension_semantics = [#tpu.dimension_semantics<parallel>], iteration_bounds = array<i64: 1>, scalar_prefetch = 0 : i64, scratch_operands = 0 : i64, tpu.core_type = #tpu.core_type<tc>, window_params = [{transform_indices = @transform_0, window_bounds = array<i64: 16, 128>}, {pipeline_mode = #tpu.pipeline_mode<synchronous>, transform_indices = @transform_1, window_bounds = array<i64: 768, 128>}, {transform_indices = @transform_2, window_bounds = array<i64: 16, 128>}]} {
    %c0 = arith.constant 0 : index
    %c0_0 = arith.constant 0 : index
    %0 = vector.load %arg1[%c0, %c0_0] : memref<16x128xbf16, #tpu.memory_space<vmem>>, vector<16x128xbf16>
    %1 = tpu.iota {dimensions = array<i32: 1>} : vector<16x128xi32>
    %c127_i32 = arith.constant 127 : i32
    %2 = vector.broadcast %c127_i32 : i32 to vector<16x128xi32>
    %3 = arith.cmpi eq, %1, %2 : vector<16x128xi32>
    %cst = arith.constant 1.000000e+00 : bf16
    %4 = vector.broadcast %cst : bf16 to vector<16x128xbf16>
    %5 = arith.select %3, %4, %0 : vector<16x128xi1>, vector<16x128xbf16>
    %c0_1 = arith.constant 0 : index
    %c0_2 = arith.constant 0 : index
    %6 = vector.load %arg2[%c0_1, %c0_2] : memref<768x128xbf16, #tpu.memory_space<vmem>>, vector<128x128xbf16>
    %cst_3 = arith.constant dense<0.000000e+00> : vector<16x128xf32>
    %7 = tpu.matmul %5, %6, %cst_3 {dimension_numbers = #tpu.dot_dimension_numbers<[1], [0], [0], [1], [0, 0, 1, 1], [], []>} : vector<16x128xbf16>, vector<128x128xbf16>, vector<16x128xf32> -> vector<16x128xf32>
    %cst_4 = arith.constant 0.000000e+00 : f32
    %8 = vector.broadcast %cst_4 : f32 to vector<16x128xf32>
    %9 = arith.cmpf ogt, %7, %8 : vector<16x128xf32>
    %cst_5 = arith.constant 0.000000e+00 : f32
    %10 = vector.broadcast %cst_5 : f32 to vector<16x128xf32>
    %11 = arith.minimumf %7, %10 : vector<16x128xf32>
    %12 = math.exp %11 : vector<16x128xf32>
    %cst_6 = arith.constant 1.000000e+00 : f32
    %13 = vector.broadcast %cst_6 : f32 to vector<16x128xf32>
    %14 = arith.subf %12, %13 : vector<16x128xf32>
    %15 = arith.select %9, %7, %14 : vector<16x128xi1>, vector<16x128xf32>
    %c128 = arith.constant 128 : index
    %c0_7 = arith.constant 0 : index
    %16 = vector.load %arg2[%c128, %c0_7] : memref<768x128xbf16, #tpu.memory_space<vmem>>, vector<128x128xbf16>
    %17 = arith.truncf %15 : vector<16x128xf32> to vector<16x128xbf16>
    %cst_8 = arith.constant dense<0.000000e+00> : vector<16x128xf32>
    %18 = tpu.matmul %17, %16, %cst_8 {dimension_numbers = #tpu.dot_dimension_numbers<[1], [0], [0], [1], [0, 0, 1, 1], [], []>} : vector<16x128xbf16>, vector<128x128xbf16>, vector<16x128xf32> -> vector<16x128xf32>
    %cst_9 = arith.constant 0.000000e+00 : f32
    %19 = vector.broadcast %cst_9 : f32 to vector<16x128xf32>
    %20 = arith.cmpf ogt, %18, %19 : vector<16x128xf32>
    %cst_10 = arith.constant 0.000000e+00 : f32
    %21 = vector.broadcast %cst_10 : f32 to vector<16x128xf32>
    %22 = arith.minimumf %18, %21 : vector<16x128xf32>
    %23 = math.exp %22 : vector<16x128xf32>
    %cst_11 = arith.constant 1.000000e+00 : f32
    %24 = vector.broadcast %cst_11 : f32 to vector<16x128xf32>
    %25 = arith.subf %23, %24 : vector<16x128xf32>
    %26 = arith.select %20, %18, %25 : vector<16x128xi1>, vector<16x128xf32>
    %c256 = arith.constant 256 : index
    %c0_12 = arith.constant 0 : index
    %27 = vector.load %arg2[%c256, %c0_12] : memref<768x128xbf16, #tpu.memory_space<vmem>>, vector<128x128xbf16>
    %28 = arith.truncf %26 : vector<16x128xf32> to vector<16x128xbf16>
    %cst_13 = arith.constant dense<0.000000e+00> : vector<16x128xf32>
    %29 = tpu.matmul %28, %27, %cst_13 {dimension_numbers = #tpu.dot_dimension_numbers<[1], [0], [0], [1], [0, 0, 1, 1], [], []>} : vector<16x128xbf16>, vector<128x128xbf16>, vector<16x128xf32> -> vector<16x128xf32>
    %c40_i32 = arith.constant 40 : i32
    %30 = vector.broadcast %c40_i32 : i32 to vector<16x128xi32>
    %31 = arith.cmpi slt, %1, %30 : vector<16x128xi32>
    %32 = math.exp %29 : vector<16x128xf32>
    %33 = arith.extf %5 : vector<16x128xbf16> to vector<16x128xf32>
    %34 = arith.mulf %32, %33 : vector<16x128xf32>
    %35 = arith.select %31, %29, %34 : vector<16x128xi1>, vector<16x128xf32>
    %c384 = arith.constant 384 : index
    %c0_14 = arith.constant 0 : index
    %36 = vector.load %arg2[%c384, %c0_14] : memref<768x128xbf16, #tpu.memory_space<vmem>>, vector<128x128xbf16>
    %37 = arith.truncf %35 : vector<16x128xf32> to vector<16x128xbf16>
    %cst_15 = arith.constant dense<0.000000e+00> : vector<16x128xf32>
    %38 = tpu.matmul %37, %36, %cst_15 {dimension_numbers = #tpu.dot_dimension_numbers<[1], [0], [0], [1], [0, 0, 1, 1], [], []>} : vector<16x128xbf16>, vector<128x128xbf16>, vector<16x128xf32> -> vector<16x128xf32>
    %c64_i32 = arith.constant 64 : i32
    %39 = vector.broadcast %c64_i32 : i32 to vector<16x128xi32>
    %40 = arith.cmpi slt, %1, %39 : vector<16x128xi32>
    %cst_16 = arith.constant 0.000000e+00 : f32
    %41 = vector.broadcast %cst_16 : f32 to vector<16x128xf32>
    %42 = arith.cmpf ogt, %38, %41 : vector<16x128xf32>
    %cst_17 = arith.constant 0.000000e+00 : f32
    %43 = vector.broadcast %cst_17 : f32 to vector<16x128xf32>
    %44 = arith.minimumf %38, %43 : vector<16x128xf32>
    %45 = math.exp %44 : vector<16x128xf32>
    %cst_18 = arith.constant 1.000000e+00 : f32
    %46 = vector.broadcast %cst_18 : f32 to vector<16x128xf32>
    %47 = arith.subf %45, %46 : vector<16x128xf32>
    %48 = arith.select %42, %38, %47 : vector<16x128xi1>, vector<16x128xf32>
    %49 = arith.select %40, %48, %38 : vector<16x128xi1>, vector<16x128xf32>
    %c512 = arith.constant 512 : index
    %c0_19 = arith.constant 0 : index
    %50 = vector.load %arg2[%c512, %c0_19] : memref<768x128xbf16, #tpu.memory_space<vmem>>, vector<128x128xbf16>
    %51 = arith.truncf %49 : vector<16x128xf32> to vector<16x128xbf16>
    %cst_20 = arith.constant dense<0.000000e+00> : vector<16x128xf32>
    %52 = tpu.matmul %51, %50, %cst_20 {dimension_numbers = #tpu.dot_dimension_numbers<[1], [0], [0], [1], [0, 0, 1, 1], [], []>} : vector<16x128xbf16>, vector<128x128xbf16>, vector<16x128xf32> -> vector<16x128xf32>
    %c64_i32_21 = arith.constant 64 : i32
    %53 = vector.broadcast %c64_i32_21 : i32 to vector<16x128xi32>
    %54 = arith.cmpi slt, %1, %53 : vector<16x128xi32>
    %cst_22 = arith.constant 0.000000e+00 : f32
    %55 = vector.broadcast %cst_22 : f32 to vector<16x128xf32>
    %56 = arith.cmpf ogt, %52, %55 : vector<16x128xf32>
    %cst_23 = arith.constant 0.000000e+00 : f32
    %57 = vector.broadcast %cst_23 : f32 to vector<16x128xf32>
    %58 = arith.minimumf %52, %57 : vector<16x128xf32>
    %59 = math.exp %58 : vector<16x128xf32>
    %cst_24 = arith.constant 1.000000e+00 : f32
    %60 = vector.broadcast %cst_24 : f32 to vector<16x128xf32>
    %61 = arith.subf %59, %60 : vector<16x128xf32>
    %62 = arith.select %56, %52, %61 : vector<16x128xi1>, vector<16x128xf32>
    %63 = arith.select %54, %62, %52 : vector<16x128xi1>, vector<16x128xf32>
    %c640 = arith.constant 640 : index
    %c0_25 = arith.constant 0 : index
    %64 = vector.load %arg2[%c640, %c0_25] : memref<768x128xbf16, #tpu.memory_space<vmem>>, vector<128x128xbf16>
    %65 = arith.truncf %63 : vector<16x128xf32> to vector<16x128xbf16>
    %cst_26 = arith.constant dense<0.000000e+00> : vector<16x128xf32>
    %66 = tpu.matmul %65, %64, %cst_26 {dimension_numbers = #tpu.dot_dimension_numbers<[1], [0], [0], [1], [0, 0, 1, 1], [], []>} : vector<16x128xbf16>, vector<128x128xbf16>, vector<16x128xf32> -> vector<16x128xf32>
    %c0_27 = arith.constant 0 : index
    %c0_28 = arith.constant 0 : index
    %67 = vector.load %arg3[%c0_27, %c0_28] : memref<16x128xf32, #tpu.memory_space<vmem>>, vector<16x128xf32>
    tpu.vector_store %arg3[%c0_27, %c0_28], %66 {strides = array<i32>} : memref<16x128xf32, #tpu.memory_space<vmem>>, vector<16x128xf32>,
    return
  }
  func.func @transform_0(%arg0: i32) -> (i32, i32) {
    %c0_i32 = arith.constant 0 : i32
    %c0_i32_0 = arith.constant 0 : i32
    return %arg0, %c0_i32 : i32, i32
  }
  func.func @transform_1(%arg0: i32) -> (i32, i32) {
    %c0_i32 = arith.constant 0 : i32
    %c0_i32_0 = arith.constant 0 : i32
    %c0_i32_1 = arith.constant 0 : i32
    return %c0_i32, %c0_i32_0 : i32, i32
  }
  func.func @transform_2(%arg0: i32) -> (i32, i32) {
    %c0_i32 = arith.constant 0 : i32
    %c0_i32_0 = arith.constant 0 : i32
    return %arg0, %c0_i32 : i32, i32
  }
}

</mosaic_0001>

<llo_original>
// kernel: forward.1
$region0: #{forward.1}
  #allocation0 [shape = 'u32[]', space=smem, size = 0x4, offset = 0x4, fixed_abs, tag = 'smem constant byte address 0x4 - core index']
  #allocation1 [shape = 'u32[72,128]{1,0:T(1,128)}', space=vmem, size = 0x9000, scoped, tag = 'internal scratch']
  %s0 = inlined_call_operand.vmem [shape: bf16[16,128], index: 0, kind: input, shape index: {}]
  %s1 = inlined_call_operand.hbm [shape: bf16[768,128], index: 1, kind: input, shape index: {}]
  %s2 = inlined_call_operand.vmem [shape: f32[16,128], index: 2, kind: output, shape index: {}]
  %s3 = sld [smem:[#allocation0]]
  $region22: #{forward.1} parent=0
    _
  %s5 = ssub.s32 1, %s3
  %s6 = scalar_select 0, %s5, %s3
  $region1: #{forward.1} parent=0
    #allocation2 [shape = 'u8[196608]{0}', space=vmem, size = 0x30000, scoped, tag = 'input window, operand 1, single buffered']
    #allocation3 [shape = 's32[1]{0}', space=sflag, size = 0x4, scoped, tag = 'scoped memory for forward.1']
    %7 = vsyncpa [#allocation3], 0
    // Predicated region
    $region2: #{forward.1} parent=1 // pred_check
      _
    $region3: #{forward.1} parent=1 // pred_check_branch
      %9 = sbr.rel (0) target = $region5
    $region4: #{forward.1} parent=1 // pred_region
      _
    $region5: #{forward.1} parent=1 // pred_fallthru
      _
    // Predicated region
    $region6: #{forward.1} parent=1 // pred_check
      _
    $region7: #{forward.1} parent=1 // pred_check_branch
      %11 = sbr.rel (0) target = $region9
    $region8: #{forward.1} parent=1 // pred_region
      %13 = vsyncadd [#allocation3], 0
      %s14 = sshll.u32 %s1, 4
      %s15 = int_to_ptr.hbm [resolvable:$true] %s14
      %s16 = sshll.u32 [#allocation2], 4
      %s17 = int_to_ptr.vmem [resolvable:$true] %s16
      %22 = dma.hbm_to_vmem [thread:$0]  %s15, 6144, %s17, [#allocation3], 64, 64, 4
    $region9: #{forward.1} parent=1 // pred_fallthru
      _
    // Predicated region
    $region10: #{forward.1} parent=1 // pred_check
      _
    $region11: #{forward.1} parent=1 // pred_check_branch
      %24 = sbr.rel (0) target = $region13
    $region12: #{forward.1} parent=1 // pred_region
      %26 = dma.done [#allocation3], 6144
    $region13: #{forward.1} parent=1 // pred_fallthru
      _
    %v28 = vld [vmem:[%s0] sm:$0xf]
    %v29 = vld [vmem:[%s0 + $0x4] sm:$0xf]
    %v30 = vlaneseq
    %v31 = vand.u32 %v30, 127
    %vm32 = vcmp.eq.s32.totalorder %v31, 127
    %vm33 = vmpackc.low %vm32, %vm32
    %v34 = vsel %vm33, 1065369472, %v28
    %v35 = vsel %vm33, 1065369472, %v29
    %v36 = vld [vmem:[#allocation2] sm:$0xf]
    %v37 = vld [vmem:[#allocation2 + $0x4] sm:$0xf]
    %v38 = vld [vmem:[#allocation2 + $0x8] sm:$0xf]
    %v39 = vld [vmem:[#allocation2 + $0xc] sm:$0xf]
    %v40 = vld [vmem:[#allocation2 + $0x10] sm:$0xf]
    %v41 = vld [vmem:[#allocation2 + $0x14] sm:$0xf]
    %v42 = vld [vmem:[#allocation2 + $0x18] sm:$0xf]
    %v43 = vld [vmem:[#allocation2 + $0x1c] sm:$0xf]
    %v44 = vld [vmem:[#allocation2 + $0x20] sm:$0xf]
    %v45 = vld [vmem:[#allocation2 + $0x24] sm:$0xf]
    %v46 = vld [vmem:[#allocation2 + $0x28] sm:$0xf]
    %v47 = vld [vmem:[#allocation2 + $0x2c] sm:$0xf]
    %v48 = vld [vmem:[#allocation2 + $0x30] sm:$0xf]
    %v49 = vld [vmem:[#allocation2 + $0x34] sm:$0xf]
    %v50 = vld [vmem:[#allocation2 + $0x38] sm:$0xf]
    %v51 = vld [vmem:[#allocation2 + $0x3c] sm:$0xf]
    %v54 = vunpack.c.l.b16 %v34
    %v55 = vunpack.c.l.b16 %v35
    %v56 = vpack.c.b16 %v55, %v54
    %v74 = vunpack.c.l.b16 %v36
    %v75 = vunpack.c.l.b16 %v37
    %v76 = vunpack.c.l.b16 %v38
    %v77 = vunpack.c.l.b16 %v39
    %v78 = vunpack.c.l.b16 %v40
    %v79 = vunpack.c.l.b16 %v41
    %v80 = vunpack.c.l.b16 %v42
    %v81 = vunpack.c.l.b16 %v43
    %v82 = vunpack.c.l.b16 %v44
    %v83 = vunpack.c.l.b16 %v45
    %v84 = vunpack.c.l.b16 %v46
    %v85 = vunpack.c.l.b16 %v47
    %v86 = vunpack.c.l.b16 %v48
    %v87 = vunpack.c.l.b16 %v49
    %v88 = vunpack.c.l.b16 %v50
    %v89 = vunpack.c.l.b16 %v51
    %v90 = vpack.c.b16 %v75, %v74
    %v91 = vpack.c.b16 %v77, %v76
    %v92 = vpack.c.b16 %v79, %v78
    %v93 = vpack.c.b16 %v81, %v80
    %v94 = vpack.c.b16 %v83, %v82
    %v95 = vpack.c.b16 %v85, %v84
    %v96 = vpack.c.b16 %v87, %v86
    %v97 = vpack.c.b16 %v89, %v88
    %106 = vmatpush.bf16.msra.mxu0 %v97
    %107 = vmatpush.bf16.msra.mxu0 %v96
    %108 = vmatpush.bf16.msra.mxu0 %v95
    %109 = vmatpush.bf16.msra.mxu0 %v94
    %110 = vmatpush.bf16.msra.mxu0 %v93
    %111 = vmatpush.bf16.msra.mxu0 %v92
    %112 = vmatpush.bf16.msra.mxu0 %v91
    %113 = vmatpush.bf16.msra.mxu0 %v90
    %114 = vmatmul.bf16.gmra.mxu0 %v56
    %v115 = vpop.f32.mrf.mxu0
    %v116 = vadd.f32 0.0, %v115
    %v117 = vpop.f32.mrf.mxu0
    %v118 = vadd.f32 0.0, %v117
    %119 = vdwg.mxu0
    %vm120 = vcmp.gt.f32.partialorder %v116, 0.0
    %vm121 = vcmp.gt.f32.partialorder %v118, 0.0
    %v122 = vmin.f32 %v116, 0.0
    %v123 = vmin.f32 %v118, 0.0
    %v124 = vmul.f32 %v122, 1.442695
    %v125 = vpow.pop %v124
    %v126 = vmul.f32 %v123, 1.442695
    %v127 = vpow.pop %v126
    %v128 = vsub.f32 %v125, 1.0
    %v129 = vsub.f32 %v127, 1.0
    %v130 = vsel %vm120, %v116, %v128
    %v131 = vsel %vm121, %v118, %v129
    %v132 = vld [vmem:[#allocation2 + $0x40] sm:$0xf]
    %v133 = vld [vmem:[#allocation2 + $0x44] sm:$0xf]
    %v134 = vld [vmem:[#allocation2 + $0x48] sm:$0xf]
    %v135 = vld [vmem:[#allocation2 + $0x4c] sm:$0xf]
    %v136 = vld [vmem:[#allocation2 + $0x50] sm:$0xf]
    %v137 = vld [vmem:[#allocation2 + $0x54] sm:$0xf]
    %v138 = vld [vmem:[#allocation2 + $0x58] sm:$0xf]
    %v139 = vld [vmem:[#allocation2 + $0x5c] sm:$0xf]
    %v140 = vld [vmem:[#allocation2 + $0x60] sm:$0xf]
    %v141 = vld [vmem:[#allocation2 + $0x64] sm:$0xf]
    %v142 = vld [vmem:[#allocation2 + $0x68] sm:$0xf]
    %v143 = vld [vmem:[#allocation2 + $0x6c] sm:$0xf]
    %v144 = vld [vmem:[#allocation2 + $0x70] sm:$0xf]
    %v145 = vld [vmem:[#allocation2 + $0x74] sm:$0xf]
    %v146 = vld [vmem:[#allocation2 + $0x78] sm:$0xf]
    %v147 = vld [vmem:[#allocation2 + $0x7c] sm:$0xf]
    %v148 = vpack.c.bf16 %v131, %v130
    %v165 = vunpack.c.l.b16 %v132
    %v166 = vunpack.c.l.b16 %v133
    %v167 = vunpack.c.l.b16 %v134
    %v168 = vunpack.c.l.b16 %v135
    %v169 = vunpack.c.l.b16 %v136
    %v170 = vunpack.c.l.b16 %v137
    %v171 = vunpack.c.l.b16 %v138
    %v172 = vunpack.c.l.b16 %v139
    %v173 = vunpack.c.l.b16 %v140
    %v174 = vunpack.c.l.b16 %v141
    %v175 = vunpack.c.l.b16 %v142
    %v176 = vunpack.c.l.b16 %v143
    %v177 = vunpack.c.l.b16 %v144
    %v178 = vunpack.c.l.b16 %v145
    %v179 = vunpack.c.l.b16 %v146
    %v180 = vunpack.c.l.b16 %v147
    %v181 = vpack.c.b16 %v166, %v165
    %v182 = vpack.c.b16 %v168, %v167
    %v183 = vpack.c.b16 %v170, %v169
    %v184 = vpack.c.b16 %v172, %v171
    %v185 = vpack.c.b16 %v174, %v173
    %v186 = vpack.c.b16 %v176, %v175
    %v187 = vpack.c.b16 %v178, %v177
    %v188 = vpack.c.b16 %v180, %v179
    %197 = vmatpush.bf16.msra.mxu0 %v188
    %198 = vmatpush.bf16.msra.mxu0 %v187
    %199 = vmatpush.bf16.msra.mxu0 %v186
    %200 = vmatpush.bf16.msra.mxu0 %v185
    %201 = vmatpush.bf16.msra.mxu0 %v184
    %202 = vmatpush.bf16.msra.mxu0 %v183
    %203 = vmatpush.bf16.msra.mxu0 %v182
    %204 = vmatpush.bf16.msra.mxu0 %v181
    %205 = vmatmul.bf16.gmra.mxu0 %v148
    %v206 = vpop.f32.mrf.mxu0
    %v207 = vadd.f32 0.0, %v206
    %v208 = vpop.f32.mrf.mxu0
    %v209 = vadd.f32 0.0, %v208
    %210 = vdwg.mxu0
    %vm211 = vcmp.gt.f32.partialorder %v207, 0.0
    %vm212 = vcmp.gt.f32.partialorder %v209, 0.0
    %v213 = vmin.f32 %v207, 0.0
    %v214 = vmin.f32 %v209, 0.0
    %v215 = vmul.f32 %v213, 1.442695
    %v216 = vpow.pop %v215
    %v217 = vmul.f32 %v214, 1.442695
    %v218 = vpow.pop %v217
    %v219 = vsub.f32 %v216, 1.0
    %v220 = vsub.f32 %v218, 1.0
    %v221 = vsel %vm211, %v207, %v219
    %v222 = vsel %vm212, %v209, %v220
    %v223 = vld [vmem:[#allocation2 + $0x80] sm:$0xf]
    %v224 = vld [vmem:[#allocation2 + $0x84] sm:$0xf]
    %v225 = vld [vmem:[#allocation2 + $0x88] sm:$0xf]
    %v226 = vld [vmem:[#allocation2 + $0x8c] sm:$0xf]
    %v227 = vld [vmem:[#allocation2 + $0x90] sm:$0xf]
    %v228 = vld [vmem:[#allocation2 + $0x94] sm:$0xf]
    %v229 = vld [vmem:[#allocation2 + $0x98] sm:$0xf]
    %v230 = vld [vmem:[#allocation2 + $0x9c] sm:$0xf]
    %v231 = vld [vmem:[#allocation2 + $0xa0] sm:$0xf]
    %v232 = vld [vmem:[#allocation2 + $0xa4] sm:$0xf]
    %v233 = vld [vmem:[#allocation2 + $0xa8] sm:$0xf]
    %v234 = vld [vmem:[#allocation2 + $0xac] sm:$0xf]
    %v235 = vld [vmem:[#allocation2 + $0xb0] sm:$0xf]
    %v236 = vld [vmem:[#allocation2 + $0xb4] sm:$0xf]
    %v237 = vld [vmem:[#allocation2 + $0xb8] sm:$0xf]
    %v238 = vld [vmem:[#allocation2 + $0xbc] sm:$0xf]
    %v239 = vpack.c.bf16 %v222, %v221
    %v256 = vunpack.c.l.b16 %v223
    %v257 = vunpack.c.l.b16 %v224
    %v258 = vunpack.c.l.b16 %v225
    %v259 = vunpack.c.l.b16 %v226
    %v260 = vunpack.c.l.b16 %v227
    %v261 = vunpack.c.l.b16 %v228
    %v262 = vunpack.c.l.b16 %v229
    %v263 = vunpack.c.l.b16 %v230
    %v264 = vunpack.c.l.b16 %v231
    %v265 = vunpack.c.l.b16 %v232
    %v266 = vunpack.c.l.b16 %v233
    %v267 = vunpack.c.l.b16 %v234
    %v268 = vunpack.c.l.b16 %v235
    %v269 = vunpack.c.l.b16 %v236
    %v270 = vunpack.c.l.b16 %v237
    %v271 = vunpack.c.l.b16 %v238
    %v272 = vpack.c.b16 %v257, %v256
    %v273 = vpack.c.b16 %v259, %v258
    %v274 = vpack.c.b16 %v261, %v260
    %v275 = vpack.c.b16 %v263, %v262
    %v276 = vpack.c.b16 %v265, %v264
    %v277 = vpack.c.b16 %v267, %v266
    %v278 = vpack.c.b16 %v269, %v268
    %v279 = vpack.c.b16 %v271, %v270
    %288 = vmatpush.bf16.msra.mxu0 %v279
    %289 = vmatpush.bf16.msra.mxu0 %v278
    %290 = vmatpush.bf16.msra.mxu0 %v277
    %291 = vmatpush.bf16.msra.mxu0 %v276
    %292 = vmatpush.bf16.msra.mxu0 %v275
    %293 = vmatpush.bf16.msra.mxu0 %v274
    %294 = vmatpush.bf16.msra.mxu0 %v273
    %295 = vmatpush.bf16.msra.mxu0 %v272
    %296 = vmatmul.bf16.gmra.mxu0 %v239
    %v297 = vpop.f32.mrf.mxu0
    %v298 = vadd.f32 0.0, %v297
    %v299 = vpop.f32.mrf.mxu0
    %v300 = vadd.f32 0.0, %v299
    %301 = vdwg.mxu0
    %vm302 = vcmp.lt.s32.totalorder %v31, 40
    %v303 = vmul.f32 %v298, 1.442695
    %v304 = vpow.pop %v303
    %v305 = vmul.f32 %v300, 1.442695
    %v306 = vpow.pop %v305
    %v307 = vunpack.c.l.bf16 %v34
    %v308 = vunpack.c.l.bf16 %v35
    %v309 = vmul.f32 %v304, %v307
    %v310 = vmul.f32 %v306, %v308
    %v311 = vsel %vm302, %v298, %v309
    %v312 = vsel %vm302, %v300, %v310
    %v313 = vld [vmem:[#allocation2 + $0xc0] sm:$0xf]
    %v314 = vld [vmem:[#allocation2 + $0xc4] sm:$0xf]
    %v315 = vld [vmem:[#allocation2 + $0xc8] sm:$0xf]
    %v316 = vld [vmem:[#allocation2 + $0xcc] sm:$0xf]
    %v317 = vld [vmem:[#allocation2 + $0xd0] sm:$0xf]
    %v318 = vld [vmem:[#allocation2 + $0xd4] sm:$0xf]
    %v319 = vld [vmem:[#allocation2 + $0xd8] sm:$0xf]
    %v320 = vld [vmem:[#allocation2 + $0xdc] sm:$0xf]
    %v321 = vld [vmem:[#allocation2 + $0xe0] sm:$0xf]
    %v322 = vld [vmem:[#allocation2 + $0xe4] sm:$0xf]
    %v323 = vld [vmem:[#allocation2 + $0xe8] sm:$0xf]
    %v324 = vld [vmem:[#allocation2 + $0xec] sm:$0xf]
    %v325 = vld [vmem:[#allocation2 + $0xf0] sm:$0xf]
    %v326 = vld [vmem:[#allocation2 + $0xf4] sm:$0xf]
    %v327 = vld [vmem:[#allocation2 + $0xf8] sm:$0xf]
    %v328 = vld [vmem:[#allocation2 + $0xfc] sm:$0xf]
    %v329 = vpack.c.bf16 %v312, %v311
    %v346 = vunpack.c.l.b16 %v313
    %v347 = vunpack.c.l.b16 %v314
    %v348 = vunpack.c.l.b16 %v315
    %v349 = vunpack.c.l.b16 %v316
    %v350 = vunpack.c.l.b16 %v317
    %v351 = vunpack.c.l.b16 %v318
    %v352 = vunpack.c.l.b16 %v319
    %v353 = vunpack.c.l.b16 %v320
    %v354 = vunpack.c.l.b16 %v321
    %v355 = vunpack.c.l.b16 %v322
    %v356 = vunpack.c.l.b16 %v323
    %v357 = vunpack.c.l.b16 %v324
    %v358 = vunpack.c.l.b16 %v325
    %v359 = vunpack.c.l.b16 %v326
    %v360 = vunpack.c.l.b16 %v327
    %v361 = vunpack.c.l.b16 %v328
    %v362 = vpack.c.b16 %v347, %v346
    %v363 = vpack.c.b16 %v349, %v348
    %v364 = vpack.c.b16 %v351, %v350
    %v365 = vpack.c.b16 %v353, %v352
    %v366 = vpack.c.b16 %v355, %v354
    %v367 = vpack.c.b16 %v357, %v356
    %v368 = vpack.c.b16 %v359, %v358
    %v369 = vpack.c.b16 %v361, %v360
    %378 = vmatpush.bf16.msra.mxu0 %v369
    %379 = vmatpush.bf16.msra.mxu0 %v368
    %380 = vmatpush.bf16.msra.mxu0 %v367
    %381 = vmatpush.bf16.msra.mxu0 %v366
    %382 = vmatpush.bf16.msra.mxu0 %v365
    %383 = vmatpush.bf16.msra.mxu0 %v364
    %384 = vmatpush.bf16.msra.mxu0 %v363
    %385 = vmatpush.bf16.msra.mxu0 %v362
    %386 = vmatmul.bf16.gmra.mxu0 %v329
    %v387 = vpop.f32.mrf.mxu0
    %v388 = vadd.f32 0.0, %v387
    %v389 = vpop.f32.mrf.mxu0
    %v390 = vadd.f32 0.0, %v389
    %391 = vdwg.mxu0
    %vm392 = vcmp.lt.s32.totalorder %v31, 64
    %vm393 = vcmp.gt.f32.partialorder %v388, 0.0
    %vm394 = vcmp.gt.f32.partialorder %v390, 0.0
    %v395 = vmin.f32 %v388, 0.0
    %v396 = vmin.f32 %v390, 0.0
    %v397 = vmul.f32 %v395, 1.442695
    %v398 = vpow.pop %v397
    %v399 = vmul.f32 %v396, 1.442695
    %v400 = vpow.pop %v399
    %v401 = vsub.f32 %v398, 1.0
    %v402 = vsub.f32 %v400, 1.0
    %v403 = vsel %vm393, %v388, %v401
    %v404 = vsel %vm394, %v390, %v402
    %v405 = vsel %vm392, %v403, %v388
    %v406 = vsel %vm392, %v404, %v390
    %v407 = vld [vmem:[#allocation2 + $0x100] sm:$0xf]
    %v408 = vld [vmem:[#allocation2 + $0x104] sm:$0xf]
    %v409 = vld [vmem:[#allocation2 + $0x108] sm:$0xf]
    %v410 = vld [vmem:[#allocation2 + $0x10c] sm:$0xf]
    %v411 = vld [vmem:[#allocation2 + $0x110] sm:$0xf]
    %v412 = vld [vmem:[#allocation2 + $0x114] sm:$0xf]
    %v413 = vld [vmem:[#allocation2 + $0x118] sm:$0xf]
    %v414 = vld [vmem:[#allocation2 + $0x11c] sm:$0xf]
    %v415 = vld [vmem:[#allocation2 + $0x120] sm:$0xf]
    %v416 = vld [vmem:[#allocation2 + $0x124] sm:$0xf]
    %v417 = vld [vmem:[#allocation2 + $0x128] sm:$0xf]
    %v418 = vld [vmem:[#allocation2 + $0x12c] sm:$0xf]
    %v419 = vld [vmem:[#allocation2 + $0x130] sm:$0xf]
    %v420 = vld [vmem:[#allocation2 + $0x134] sm:$0xf]
    %v421 = vld [vmem:[#allocation2 + $0x138] sm:$0xf]
    %v422 = vld [vmem:[#allocation2 + $0x13c] sm:$0xf]
    %v423 = vpack.c.bf16 %v406, %v405
    %v440 = vunpack.c.l.b16 %v407
    %v441 = vunpack.c.l.b16 %v408
    %v442 = vunpack.c.l.b16 %v409
    %v443 = vunpack.c.l.b16 %v410
    %v444 = vunpack.c.l.b16 %v411
    %v445 = vunpack.c.l.b16 %v412
    %v446 = vunpack.c.l.b16 %v413
    %v447 = vunpack.c.l.b16 %v414
    %v448 = vunpack.c.l.b16 %v415
    %v449 = vunpack.c.l.b16 %v416
    %v450 = vunpack.c.l.b16 %v417
    %v451 = vunpack.c.l.b16 %v418
    %v452 = vunpack.c.l.b16 %v419
    %v453 = vunpack.c.l.b16 %v420
    %v454 = vunpack.c.l.b16 %v421
    %v455 = vunpack.c.l.b16 %v422
    %v456 = vpack.c.b16 %v441, %v440
    %v457 = vpack.c.b16 %v443, %v442
    %v458 = vpack.c.b16 %v445, %v444
    %v459 = vpack.c.b16 %v447, %v446
    %v460 = vpack.c.b16 %v449, %v448
    %v461 = vpack.c.b16 %v451, %v450
    %v462 = vpack.c.b16 %v453, %v452
    %v463 = vpack.c.b16 %v455, %v454
    %472 = vmatpush.bf16.msra.mxu0 %v463
    %473 = vmatpush.bf16.msra.mxu0 %v462
    %474 = vmatpush.bf16.msra.mxu0 %v461
    %475 = vmatpush.bf16.msra.mxu0 %v460
    %476 = vmatpush.bf16.msra.mxu0 %v459
    %477 = vmatpush.bf16.msra.mxu0 %v458
    %478 = vmatpush.bf16.msra.mxu0 %v457
    %479 = vmatpush.bf16.msra.mxu0 %v456
    %480 = vmatmul.bf16.gmra.mxu0 %v423
    %v481 = vpop.f32.mrf.mxu0
    %v482 = vadd.f32 0.0, %v481
    %v483 = vpop.f32.mrf.mxu0
    %v484 = vadd.f32 0.0, %v483
    %485 = vdwg.mxu0
    %vm486 = vcmp.gt.f32.partialorder %v482, 0.0
    %vm487 = vcmp.gt.f32.partialorder %v484, 0.0
    %v488 = vmin.f32 %v482, 0.0
    %v489 = vmin.f32 %v484, 0.0
    %v490 = vmul.f32 %v488, 1.442695
    %v491 = vpow.pop %v490
    %v492 = vmul.f32 %v489, 1.442695
    %v493 = vpow.pop %v492
    %v494 = vsub.f32 %v491, 1.0
    %v495 = vsub.f32 %v493, 1.0
    %v496 = vsel %vm486, %v482, %v494
    %v497 = vsel %vm487, %v484, %v495
    %v498 = vsel %vm392, %v496, %v482
    %v499 = vsel %vm392, %v497, %v484
    %v500 = vld [vmem:[#allocation2 + $0x140] sm:$0xf]
    %v501 = vld [vmem:[#allocation2 + $0x144] sm:$0xf]
    %v502 = vld [vmem:[#allocation2 + $0x148] sm:$0xf]
    %v503 = vld [vmem:[#allocation2 + $0x14c] sm:$0xf]
    %v504 = vld [vmem:[#allocation2 + $0x150] sm:$0xf]
    %v505 = vld [vmem:[#allocation2 + $0x154] sm:$0xf]
    %v506 = vld [vmem:[#allocation2 + $0x158] sm:$0xf]
    %v507 = vld [vmem:[#allocation2 + $0x15c] sm:$0xf]
    %v508 = vld [vmem:[#allocation2 + $0x160] sm:$0xf]
    %v509 = vld [vmem:[#allocation2 + $0x164] sm:$0xf]
    %v510 = vld [vmem:[#allocation2 + $0x168] sm:$0xf]
    %v511 = vld [vmem:[#allocation2 + $0x16c] sm:$0xf]
    %v512 = vld [vmem:[#allocation2 + $0x170] sm:$0xf]
    %v513 = vld [vmem:[#allocation2 + $0x174] sm:$0xf]
    %v514 = vld [vmem:[#allocation2 + $0x178] sm:$0xf]
    %v515 = vld [vmem:[#allocation2 + $0x17c] sm:$0xf]
    %v516 = vpack.c.bf16 %v499, %v498
    %v533 = vunpack.c.l.b16 %v500
    %v534 = vunpack.c.l.b16 %v501
    %v535 = vunpack.c.l.b16 %v502
    %v536 = vunpack.c.l.b16 %v503
    %v537 = vunpack.c.l.b16 %v504
    %v538 = vunpack.c.l.b16 %v505
    %v539 = vunpack.c.l.b16 %v506
    %v540 = vunpack.c.l.b16 %v507
    %v541 = vunpack.c.l.b16 %v508
    %v542 = vunpack.c.l.b16 %v509
    %v543 = vunpack.c.l.b16 %v510
    %v544 = vunpack.c.l.b16 %v511
    %v545 = vunpack.c.l.b16 %v512
    %v546 = vunpack.c.l.b16 %v513
    %v547 = vunpack.c.l.b16 %v514
    %v548 = vunpack.c.l.b16 %v515
    %v549 = vpack.c.b16 %v534, %v533
    %v550 = vpack.c.b16 %v536, %v535
    %v551 = vpack.c.b16 %v538, %v537
    %v552 = vpack.c.b16 %v540, %v539
    %v553 = vpack.c.b16 %v542, %v541
    %v554 = vpack.c.b16 %v544, %v543
    %v555 = vpack.c.b16 %v546, %v545
    %v556 = vpack.c.b16 %v548, %v547
    %565 = vmatpush.bf16.msra.mxu0 %v556
    %566 = vmatpush.bf16.msra.mxu0 %v555
    %567 = vmatpush.bf16.msra.mxu0 %v554
    %568 = vmatpush.bf16.msra.mxu0 %v553
    %569 = vmatpush.bf16.msra.mxu0 %v552
    %570 = vmatpush.bf16.msra.mxu0 %v551
    %571 = vmatpush.bf16.msra.mxu0 %v550
    %572 = vmatpush.bf16.msra.mxu0 %v549
    %573 = vmatmul.bf16.gmra.mxu0 %v516
    %v574 = vpop.f32.mrf.mxu0
    %v575 = vadd.f32 0.0, %v574
    %v576 = vpop.f32.mrf.mxu0
    %v577 = vadd.f32 0.0, %v576
    %578 = vdwg.mxu0
    %579 = vst [vmem:[%s2] sm:$0xff] %v575
    %580 = vst [vmem:[%s2 + $0x8] sm:$0xff] %v577
    // Predicated region
    $region14: #{forward.1} parent=1 // pred_check
      _
    $region15: #{forward.1} parent=1 // pred_check_branch
      %582 = sbr.rel (0) target = $region17
    $region16: #{forward.1} parent=1 // pred_region
      _
    $region17: #{forward.1} parent=1 // pred_fallthru
      _
    // Predicated region
    $region18: #{forward.1} parent=1 // pred_check
      _
    $region19: #{forward.1} parent=1 // pred_check_branch
      %584 = sbr.rel (0) target = $region21
    $region20: #{forward.1} parent=1 // pred_region
      _
    $region21: #{forward.1} parent=1 // pred_fallthru
      _
    %585 = vsyncpa [#allocation3], 1

</llo_original>
